<compile_context>
chip_gen: v7x
topology: tpu7x:2x2x1
jax: 0.10.0
libtpu: 0.0.40
codegen_flags: <defaults>
</compile_context>

<pallas_src>
import functools

import jax
import jax.numpy as jnp
from jax import lax
from jax.experimental import pallas as pl
from jax.experimental.pallas import tpu as pltpu

_LANE = 128


def _round_up(x, m):
    return (x + m - 1) // m * m


def _vmem_plan():
    """Per-generation plan: (vmem_limit_bytes, residency_budget_bytes, n_tc)."""
    kind = ""
    try:
        kind = jax.devices()[0].device_kind.lower()
    except Exception:  # pragma: no cover - defensive; fall through to default
        pass
    if "v7" in kind:
        # v7x: 64 MiB physical VMEM per TensorCore (32 MiB scoped default);
        # raise the limit to 48 MiB and size residency to 36 MiB.  2 TCs/chip.
        return 48 << 20, 36 << 20, 2
    # v5e / v6e: 128 MiB physical (16 / 32 MiB scoped defaults); raise to 64.
    return 64 << 20, 48 << 20, 1


def _accumulate_slabs(x_ref, acc, *, base=None, total=None):
    """acc += sum_g x_ref[g] (f32), one slab at a time.

    Keeps the live set to one (ts, H) slab + the accumulator (no full-block
    f32 materialization).  If base/total are given, slabs whose global index
    base+g >= total are masked out (remainder block of a ceil-div reduction).
    """
    n = x_ref.shape[0]

    def add(g, a):
        slab = x_ref[g].astype(jnp.float32)
        if base is not None:
            slab = jnp.where(base + g < total, slab, 0.0)
        return a + slab

    if n <= 16:  # short fixed loop: static unroll for LLO visibility
        for g in range(n):
            acc = add(g, acc)
        return acc
    return lax.fori_loop(0, n, add, acc, unroll=8)


def _pooling_classifier_single_kernel(x_ref, w_ref, b_ref, o_ref, *, inv_n):
    """Whole reduction in one grid step per seq tile (no scratch, no pl.when).

    x_ref : (LB, ts, H)  all layer*batch slabs for this seq tile
    w_ref : (H, O)       classifier weight (torch weight.T)
    b_ref : (1, O)       classifier bias
    o_ref : (ts, O)      output logits
    """
    acc = _accumulate_slabs(x_ref, jnp.zeros(x_ref.shape[1:], jnp.float32))
    logits = jnp.dot(acc, w_ref[...], preferred_element_type=jnp.float32)
    o_ref[...] = (logits * inv_n + b_ref[...]).astype(o_ref.dtype)


def _pooling_classifier_chunked_kernel(x_ref, w_ref, b_ref, o_ref, acc_ref, *,
                                       inv_n, total_slabs, mask_remainder):
    """Chunked reduction: G slabs per step, resident f32 accumulator.

    Grid = (seq_tiles [parallel], reduction_steps [arbitrary]).
    x_ref  : (G, ts, H) slabs for this (seq tile, reduction step)
    acc_ref: (ts, H)    f32 running sum, resident across the reduction axis
    """
    r = pl.program_id(1)

    @pl.when(r == 0)
    def _():
        acc_ref[...] = jnp.zeros_like(acc_ref)

    g_block = x_ref.shape[0]
    base = r * g_block if mask_remainder else None
    acc_ref[...] = _accumulate_slabs(x_ref, acc_ref[...],
                                     base=base, total=total_slabs)

    @pl.when(r == pl.num_programs(1) - 1)
    def _():
        logits = jnp.dot(acc_ref[...], w_ref[...],
                         preferred_element_type=jnp.float32)
        o_ref[...] = (logits * inv_n + b_ref[...]).astype(o_ref.dtype)


def bert_pooling_classifier(encoded_layers, weight, bias):
    """encoded_layers: [L, B, S, H] (f32 or bf16), weight: [H, O], bias: [O]."""
    L, B, S, H = encoded_layers.shape
    O = weight.shape[1]
    LB = L * B
    x = encoded_layers.reshape(LB, S, H)
    b2d = bias.reshape(1, O)
    inv_n = 1.0 / LB
    itemsize = x.dtype.itemsize

    vmem_limit, residency_budget, n_tc = _vmem_plan()

    def cparams(sem):
        return pltpu.CompilerParams(dimension_semantics=sem,
                                    vmem_limit_bytes=vmem_limit)

    # ---- seq tiling --------------------------------------------------------
    # bf16 packs sublanes in pairs: keep >=16 rows per tile (>=8 for f32).
    min_rows = 16 if itemsize == 2 else 8
    if S >= 256 and S % 128 == 0:
        ts = 128                              # many tiles: fine everywhere
    elif n_tc >= 2 and S >= 2 * min_rows and S % (2 * min_rows) == 0:
        ts = S // 2                           # feed v7x's second TensorCore
    else:
        ts = S
    n_seq = S // ts

    # ---- VMEM residency accounting (lane dim pads to 128) ------------------
    o_pad = _round_up(O, _LANE)
    fixed = 2 * H * o_pad * weight.dtype.itemsize          # weight (2 bufs)
    fixed += 2 * 8 * o_pad * 4                              # bias  (2 bufs)
    fixed += 2 * _round_up(ts, 8) * o_pad * 4               # output(2 bufs)
    slab_bytes = _round_up(ts, min_rows) * H * itemsize     # one (ts,H) slab
    acc_bytes = _round_up(ts, 8) * H * 4                    # f32 accumulator

    x_budget_single = residency_budget - fixed
    x_budget_chunked = residency_budget - fixed - acc_bytes

    def single_path(pipeline_mode=None):
        kw = {} if pipeline_mode is None else {"pipeline_mode": pipeline_mode}
        return pl.pallas_call(
            functools.partial(_pooling_classifier_single_kernel, inv_n=inv_n),
            out_shape=jax.ShapeDtypeStruct((S, O), jnp.float32),
            grid_spec=pltpu.PrefetchScalarGridSpec(
                num_scalar_prefetch=0,
                grid=(n_seq,),
                in_specs=[
                    pl.BlockSpec((LB, ts, H), lambda i: (0, i, 0), **kw),
                    pl.BlockSpec((H, O), lambda i: (0, 0)),
                    pl.BlockSpec((1, O), lambda i: (0, 0)),
                ],
                out_specs=pl.BlockSpec((ts, O), lambda i: (i, 0)),
            ),
            compiler_params=cparams(("parallel",)),
        )(x, weight, b2d)

    def chunked_path():
        g_max = max(1, x_budget_chunked // (2 * slab_bytes))
        g = int(min(g_max, LB))
        n_red = (LB + g - 1) // g
        mask_remainder = (LB % g) != 0
        return pl.pallas_call(
            functools.partial(_pooling_classifier_chunked_kernel,
                              inv_n=inv_n, total_slabs=LB,
                              mask_remainder=mask_remainder),
            out_shape=jax.ShapeDtypeStruct((S, O), jnp.float32),
            grid_spec=pltpu.PrefetchScalarGridSpec(
                num_scalar_prefetch=0,
                grid=(n_seq, n_red),
                in_specs=[
                    pl.BlockSpec((g, ts, H), lambda i, r: (r, i, 0)),
                    pl.BlockSpec((H, O), lambda i, r: (0, 0)),
                    pl.BlockSpec((1, O), lambda i, r: (0, 0)),
                ],
                out_specs=pl.BlockSpec((ts, O), lambda i, r: (i, 0)),
                scratch_shapes=[pltpu.VMEM((ts, H), jnp.float32)],
            ),
            compiler_params=cparams(("parallel", "arbitrary")),
        )(x, weight, b2d)

    # Whole stack fits double-buffered -> cheapest path (no scratch, no when).
    if 2 * LB * slab_bytes <= x_budget_single:
        return single_path()
    # Grid would be a single step: nothing to pipeline against, so single-
    # buffer x to admit ~2x larger stacks on the cheap path.
    if n_seq == 1 and LB * slab_bytes <= x_budget_single:
        try:
            return single_path(pipeline_mode=pl.Buffered(1))
        except Exception:
            pass  # fall back to the chunked reduction below
    return chunked_path()


if __name__ == "__main__":
    # Small shapes consistent with the forward pass: L encoder layers, batch B,
    # seq S, hidden H=768 (fixed by nn.Linear(768, output_dim)), output_dim=2.
    L, B, S, H, O = 4, 2, 8, 768, 2

    key = jax.random.PRNGKey(0)
    k_x, k_w = jax.random.split(key)

    # Synthetic "encoded_layers" (stand-in for frozen BERT outputs).
    encoded_layers = jax.random.normal(k_x, (L, B, S, H), dtype=jnp.float32)

    # xavier_normal_ on the torch weight [O, H], stored transposed as [H, O].
    xavier_std = (2.0 / (H + O)) ** 0.5
    weight = jax.random.normal(k_w, (H, O), dtype=jnp.float32) * xavier_std
    bias = jnp.zeros((O,), dtype=jnp.float32)

    out = bert_pooling_classifier(encoded_layers, weight, bias)
    out = jax.block_until_ready(out)

    # Pure-JAX reference check of the hot path (f32 streaming).
    ref = encoded_layers.mean(axis=0).mean(axis=0) @ weight + bias
    assert out.shape == (S, O)
    assert jnp.allclose(out, ref, atol=1e-4, rtol=1e-4), "f32 mismatch vs reference"

    # bf16 streaming path (halves HBM bytes; in-kernel accumulation stays f32).
    enc_bf16 = encoded_layers.astype(jnp.bfloat16)
    out_bf16 = jax.block_until_ready(
        bert_pooling_classifier(enc_bf16, weight, bias))
    ref_bf16 = (enc_bf16.astype(jnp.float32).mean(axis=0).mean(axis=0)
                @ weight + bias)
    assert jnp.allclose(out_bf16, ref_bf16, atol=2e-3, rtol=2e-3), "bf16 mismatch"

    print("KERNEL_OK")
</pallas_src>

<mosaic_0001>
module attributes {stable_mosaic.version = 11 : i64} {
  func.func @_pooling_classifier_single_kernel(%arg0: i32, %arg1: memref<8x8x768xf32, #tpu.memory_space<vmem>>, %arg2: memref<768x2xf32, #tpu.memory_space<vmem>>, %arg3: memref<1x2xf32, #tpu.memory_space<vmem>>, %arg4: memref<8x2xf32, #tpu.memory_space<vmem>>) attributes {dimension_semantics = [#tpu.dimension_semantics<parallel>], iteration_bounds = array<i64: 1>, scalar_prefetch = 0 : i64, scratch_operands = 0 : i64, tpu.core_type = #tpu.core_type<tc>, window_params = [{transform_indices = @transform_0, window_bounds = array<i64: 8, 8, 768>}, {pipeline_mode = #tpu.pipeline_mode<synchronous>, transform_indices = @transform_1, window_bounds = array<i64: 768, 2>}, {pipeline_mode = #tpu.pipeline_mode<synchronous>, transform_indices = @transform_2, window_bounds = array<i64: 1, 2>}, {transform_indices = @transform_3, window_bounds = array<i64: 8, 2>}]} {
    %cst = arith.constant 0.000000e+00 : f32
    %0 = vector.broadcast %cst : f32 to vector<8x768xf32>
    %c0 = arith.constant 0 : index
    %c0_0 = arith.constant 0 : index
    %c0_1 = arith.constant 0 : index
    %1 = vector.load %arg1[%c0, %c0_0, %c0_1] : memref<8x8x768xf32, #tpu.memory_space<vmem>>, vector<1x8x768xf32>
    %2 = vector.shape_cast %1 : vector<1x8x768xf32> to vector<8x768xf32>
    %3 = arith.addf %0, %2 : vector<8x768xf32>
    %c1 = arith.constant 1 : index
    %c0_2 = arith.constant 0 : index
    %c0_3 = arith.constant 0 : index
    %4 = vector.load %arg1[%c1, %c0_2, %c0_3] : memref<8x8x768xf32, #tpu.memory_space<vmem>>, vector<1x8x768xf32>
    %5 = vector.shape_cast %4 : vector<1x8x768xf32> to vector<8x768xf32>
    %6 = arith.addf %3, %5 : vector<8x768xf32>
    %c2 = arith.constant 2 : index
    %c0_4 = arith.constant 0 : index
    %c0_5 = arith.constant 0 : index
    %7 = vector.load %arg1[%c2, %c0_4, %c0_5] : memref<8x8x768xf32, #tpu.memory_space<vmem>>, vector<1x8x768xf32>
    %8 = vector.shape_cast %7 : vector<1x8x768xf32> to vector<8x768xf32>
    %9 = arith.addf %6, %8 : vector<8x768xf32>
    %c3 = arith.constant 3 : index
    %c0_6 = arith.constant 0 : index
    %c0_7 = arith.constant 0 : index
    %10 = vector.load %arg1[%c3, %c0_6, %c0_7] : memref<8x8x768xf32, #tpu.memory_space<vmem>>, vector<1x8x768xf32>
    %11 = vector.shape_cast %10 : vector<1x8x768xf32> to vector<8x768xf32>
    %12 = arith.addf %9, %11 : vector<8x768xf32>
    %c4 = arith.constant 4 : index
    %c0_8 = arith.constant 0 : index
    %c0_9 = arith.constant 0 : index
    %13 = vector.load %arg1[%c4, %c0_8, %c0_9] : memref<8x8x768xf32, #tpu.memory_space<vmem>>, vector<1x8x768xf32>
    %14 = vector.shape_cast %13 : vector<1x8x768xf32> to vector<8x768xf32>
    %15 = arith.addf %12, %14 : vector<8x768xf32>
    %c5 = arith.constant 5 : index
    %c0_10 = arith.constant 0 : index
    %c0_11 = arith.constant 0 : index
    %16 = vector.load %arg1[%c5, %c0_10, %c0_11] : memref<8x8x768xf32, #tpu.memory_space<vmem>>, vector<1x8x768xf32>
    %17 = vector.shape_cast %16 : vector<1x8x768xf32> to vector<8x768xf32>
    %18 = arith.addf %15, %17 : vector<8x768xf32>
    %c6 = arith.constant 6 : index
    %c0_12 = arith.constant 0 : index
    %c0_13 = arith.constant 0 : index
    %19 = vector.load %arg1[%c6, %c0_12, %c0_13] : memref<8x8x768xf32, #tpu.memory_space<vmem>>, vector<1x8x768xf32>
    %20 = vector.shape_cast %19 : vector<1x8x768xf32> to vector<8x768xf32>
    %21 = arith.addf %18, %20 : vector<8x768xf32>
    %c7 = arith.constant 7 : index
    %c0_14 = arith.constant 0 : index
    %c0_15 = arith.constant 0 : index
    %22 = vector.load %arg1[%c7, %c0_14, %c0_15] : memref<8x8x768xf32, #tpu.memory_space<vmem>>, vector<1x8x768xf32>
    %23 = vector.shape_cast %22 : vector<1x8x768xf32> to vector<8x768xf32>
    %24 = arith.addf %21, %23 : vector<8x768xf32>
    %c0_16 = arith.constant 0 : index
    %c0_17 = arith.constant 0 : index
    %25 = vector.load %arg2[%c0_16, %c0_17] : memref<768x2xf32, #tpu.memory_space<vmem>>, vector<768x2xf32>
    %cst_18 = arith.constant dense<0.000000e+00> : vector<8x2xf32>
    %26 = tpu.matmul %24, %25, %cst_18 {dimension_numbers = #tpu.dot_dimension_numbers<[1], [0], [0], [1], [0, 0, 1, 1], [], []>} : vector<8x768xf32>, vector<768x2xf32>, vector<8x2xf32> -> vector<8x2xf32>
    %cst_19 = arith.constant 1.250000e-01 : f32
    %27 = vector.broadcast %cst_19 : f32 to vector<8x2xf32>
    %28 = arith.mulf %26, %27 : vector<8x2xf32>
    %c0_20 = arith.constant 0 : index
    %c0_21 = arith.constant 0 : index
    %29 = vector.load %arg3[%c0_20, %c0_21] : memref<1x2xf32, #tpu.memory_space<vmem>>, vector<1x2xf32>
    %30 = vector.broadcast %29 : vector<1x2xf32> to vector<8x2xf32>
    %31 = arith.addf %28, %30 : vector<8x2xf32>
    %c0_22 = arith.constant 0 : index
    %c0_23 = arith.constant 0 : index
    %32 = vector.load %arg4[%c0_22, %c0_23] : memref<8x2xf32, #tpu.memory_space<vmem>>, vector<8x2xf32>
    tpu.vector_store %arg4[%c0_22, %c0_23], %31 {strides = array<i32>} : memref<8x2xf32, #tpu.memory_space<vmem>>, vector<8x2xf32>,
    return
  }
  func.func @transform_0(%arg0: i32) -> (i32, i32, i32) {
    %c0_i32 = arith.constant 0 : i32
    %c0_i32_0 = arith.constant 0 : i32
    %c0_i32_1 = arith.constant 0 : i32
    return %c0_i32, %arg0, %c0_i32_0 : i32, i32, i32
  }
  func.func @transform_1(%arg0: i32) -> (i32, i32) {
    %c0_i32 = arith.constant 0 : i32
    %c0_i32_0 = arith.constant 0 : i32
    %c0_i32_1 = arith.constant 0 : i32
    return %c0_i32, %c0_i32_0 : i32, i32
  }
  func.func @transform_2(%arg0: i32) -> (i32, i32) {
    %c0_i32 = arith.constant 0 : i32
    %c0_i32_0 = arith.constant 0 : i32
    %c0_i32_1 = arith.constant 0 : i32
    return %c0_i32, %c0_i32_0 : i32, i32
  }
  func.func @transform_3(%arg0: i32) -> (i32, i32) {
    %c0_i32 = arith.constant 0 : i32
    %c0_i32_0 = arith.constant 0 : i32
    return %arg0, %c0_i32 : i32, i32
  }
}

</mosaic_0001>

<llo_original>
// kernel: tpu_custom_call.1
$region0: #{tpu_custom_call.1}
  #allocation0 [shape = 'u32[]', space=smem, size = 0x4, offset = 0x4, fixed_abs, tag = 'smem constant byte address 0x4 - core index']
  #allocation1 [shape = 'u32[144,128]{1,0:T(1,128)}', space=vmem, size = 0x12000, scoped, tag = 'internal scratch']
  %s0 = inlined_call_operand.hbm [shape: f32[8,8,768], index: 0, kind: input, shape index: {}]
  %s1 = inlined_call_operand.hbm [shape: f32[768,2], index: 1, kind: input, shape index: {}]
  %s2 = inlined_call_operand.hbm [shape: f32[1,2], index: 2, kind: input, shape index: {}]
  %s3 = inlined_call_operand.hbm [shape: f32[8,2], index: 3, kind: output, shape index: {}]
  %s4 = sld [smem:[#allocation0]]
  $region34: #{tpu_custom_call.1} parent=0
    _
  %s6 = ssub.s32 1, %s4
  %s7 = scalar_select 0, %s6, %s4
  $region1: #{tpu_custom_call.1} parent=0
    #allocation2 [shape = 'u8[196608]{0}', space=vmem, size = 0x30000, scoped, tag = 'input window, operand 0, single buffered']
    #allocation3 [shape = 's32[1]{0}', space=sflag, size = 0x4, scoped, tag = 'scoped memory for tpu_custom_call.1']
    #allocation4 [shape = 's32[1]{0}', space=sflag, size = 0x4, scoped, tag = 'scoped memory for tpu_custom_call.1']
    #allocation5 [shape = 'u8[393216]{0}', space=vmem, size = 0x60000, scoped, tag = 'input window, operand 1, single buffered']
    #allocation6 [shape = 's32[1]{0}', space=sflag, size = 0x4, scoped, tag = 'scoped memory for tpu_custom_call.1']
    #allocation7 [shape = 'u8[512]{0}', space=vmem, size = 0x400, scoped, tag = 'input window, operand 2, single buffered']
    #allocation8 [shape = 'u8[4096]{0}', space=vmem, size = 0x1000, scoped, tag = 'output window, operand 0, single buffered']
    %8 = vsyncpa [#allocation3], 0
    %9 = vsyncpa [#allocation6], 0
    %10 = vsyncpa [#allocation4], 0
    // Predicated region
    $region2: #{tpu_custom_call.1} parent=1 // pred_check
      _
    $region3: #{tpu_custom_call.1} parent=1 // pred_check_branch
      %12 = sbr.rel (0) target = $region5
    $region4: #{tpu_custom_call.1} parent=1 // pred_region
      %s14 = ssub.s32 6144, 6144
      %15 = vsyncadd [#allocation3], %s14
      %s16 = sshll.u32 [#allocation2], 4
      %s17 = int_to_ptr.vmem [resolvable:$true] %s16
      %22 = dma.hbm_to_vmem [thread:$0]  %s0, 6144, %s17, [#allocation3], 768, 768, 48
    $region5: #{tpu_custom_call.1} parent=1 // pred_fallthru
      _
    // Predicated region
    $region6: #{tpu_custom_call.1} parent=1 // pred_check
      _
    $region7: #{tpu_custom_call.1} parent=1 // pred_check_branch
      %24 = sbr.rel (0) target = $region9
    $region8: #{tpu_custom_call.1} parent=1 // pred_region
      %s26 = ssub.s32 12288, 12288
      %27 = vsyncadd [#allocation6], %s26
      %s28 = sshll.u32 [#allocation5], 4
      %s29 = int_to_ptr.vmem [resolvable:$true] %s28
      %34 = dma.hbm_to_vmem [thread:$0]  %s1, 12288, %s29, [#allocation6], 128, 128, 8
    $region9: #{tpu_custom_call.1} parent=1 // pred_fallthru
      _
    // Predicated region
    $region10: #{tpu_custom_call.1} parent=1 // pred_check
      _
    $region11: #{tpu_custom_call.1} parent=1 // pred_check_branch
      %36 = sbr.rel (0) target = $region13
    $region12: #{tpu_custom_call.1} parent=1 // pred_region
      %s38 = ssub.s32 16, 16
      %39 = vsyncadd [#allocation6], %s38
      %s41 = sshll.u32 [#allocation7], 4
      %s42 = int_to_ptr.vmem [resolvable:$true] %s41
      %44 = dma.hbm_to_vmem [thread:$0]  %s2, 16, %s42, [#allocation6]
    $region13: #{tpu_custom_call.1} parent=1 // pred_fallthru
      _
    // Predicated region
    $region14: #{tpu_custom_call.1} parent=1 // pred_check
      _
    $region15: #{tpu_custom_call.1} parent=1 // pred_check_branch
      %46 = sbr.rel (0) target = $region17
    $region16: #{tpu_custom_call.1} parent=1 // pred_region
      %47 = dma.done [#allocation3], 6144
    $region17: #{tpu_custom_call.1} parent=1 // pred_fallthru
      _
    // Predicated region
    $region18: #{tpu_custom_call.1} parent=1 // pred_check
      _
    $region19: #{tpu_custom_call.1} parent=1 // pred_check_branch
      %49 = sbr.rel (0) target = $region21
    $region20: #{tpu_custom_call.1} parent=1 // pred_region
      %50 = dma.done [#allocation6], 12288
    $region21: #{tpu_custom_call.1} parent=1 // pred_fallthru
      _
    // Predicated region
    $region22: #{tpu_custom_call.1} parent=1 // pred_check
      _
    $region23: #{tpu_custom_call.1} parent=1 // pred_check_branch
      %52 = sbr.rel (0) target = $region25
    $region24: #{tpu_custom_call.1} parent=1 // pred_region
      %53 = dma.done [#allocation6], 16
    $region25: #{tpu_custom_call.1} parent=1 // pred_fallthru
      _
    %v54 = vld [vmem:[#allocation2] sm:$0xff]
    %v55 = vld [vmem:[#allocation2 + $0x8] sm:$0xff]
    %v56 = vld [vmem:[#allocation2 + $0x10] sm:$0xff]
    %v57 = vld [vmem:[#allocation2 + $0x18] sm:$0xff]
    %v58 = vld [vmem:[#allocation2 + $0x20] sm:$0xff]
    %v59 = vld [vmem:[#allocation2 + $0x28] sm:$0xff]
    %v60 = vadd.f32 %v54, 0.0
    %v61 = vadd.f32 %v55, 0.0
    %v62 = vadd.f32 %v56, 0.0
    %v63 = vadd.f32 %v57, 0.0
    %v64 = vadd.f32 %v58, 0.0
    %v65 = vadd.f32 %v59, 0.0
    %s66 = scalar_lea.vmem [#allocation2], 48
    %v67 = vld [vmem:[%s66] sm:$0xff]
    %v68 = vld [vmem:[%s66 + $0x8] sm:$0xff]
    %v69 = vld [vmem:[%s66 + $0x10] sm:$0xff]
    %v70 = vld [vmem:[%s66 + $0x18] sm:$0xff]
    %v71 = vld [vmem:[%s66 + $0x20] sm:$0xff]
    %v72 = vld [vmem:[%s66 + $0x28] sm:$0xff]
    %v73 = vadd.f32 %v60, %v67
    %v74 = vadd.f32 %v61, %v68
    %v75 = vadd.f32 %v62, %v69
    %v76 = vadd.f32 %v63, %v70
    %v77 = vadd.f32 %v64, %v71
    %v78 = vadd.f32 %v65, %v72
    %s79 = scalar_lea.vmem [#allocation2], 96
    %v80 = vld [vmem:[%s79] sm:$0xff]
    %v81 = vld [vmem:[%s79 + $0x8] sm:$0xff]
    %v82 = vld [vmem:[%s79 + $0x10] sm:$0xff]
    %v83 = vld [vmem:[%s79 + $0x18] sm:$0xff]
    %v84 = vld [vmem:[%s79 + $0x20] sm:$0xff]
    %v85 = vld [vmem:[%s79 + $0x28] sm:$0xff]
    %v86 = vadd.f32 %v73, %v80
    %v87 = vadd.f32 %v74, %v81
    %v88 = vadd.f32 %v75, %v82
    %v89 = vadd.f32 %v76, %v83
    %v90 = vadd.f32 %v77, %v84
    %v91 = vadd.f32 %v78, %v85
    %s92 = scalar_lea.vmem [#allocation2], 144
    %v93 = vld [vmem:[%s92] sm:$0xff]
    %v94 = vld [vmem:[%s92 + $0x8] sm:$0xff]
    %v95 = vld [vmem:[%s92 + $0x10] sm:$0xff]
    %v96 = vld [vmem:[%s92 + $0x18] sm:$0xff]
    %v97 = vld [vmem:[%s92 + $0x20] sm:$0xff]
    %v98 = vld [vmem:[%s92 + $0x28] sm:$0xff]
    %v99 = vadd.f32 %v86, %v93
    %v100 = vadd.f32 %v87, %v94
    %v101 = vadd.f32 %v88, %v95
    %v102 = vadd.f32 %v89, %v96
    %v103 = vadd.f32 %v90, %v97
    %v104 = vadd.f32 %v91, %v98
    %s105 = scalar_lea.vmem [#allocation2], 192
    %v106 = vld [vmem:[%s105] sm:$0xff]
    %v107 = vld [vmem:[%s105 + $0x8] sm:$0xff]
    %v108 = vld [vmem:[%s105 + $0x10] sm:$0xff]
    %v109 = vld [vmem:[%s105 + $0x18] sm:$0xff]
    %v110 = vld [vmem:[%s105 + $0x20] sm:$0xff]
    %v111 = vld [vmem:[%s105 + $0x28] sm:$0xff]
    %v112 = vadd.f32 %v99, %v106
    %v113 = vadd.f32 %v100, %v107
    %v114 = vadd.f32 %v101, %v108
    %v115 = vadd.f32 %v102, %v109
    %v116 = vadd.f32 %v103, %v110
    %v117 = vadd.f32 %v104, %v111
    %s118 = scalar_lea.vmem [#allocation2], 240
    %v119 = vld [vmem:[%s118] sm:$0xff]
    %v120 = vld [vmem:[%s118 + $0x8] sm:$0xff]
    %v121 = vld [vmem:[%s118 + $0x10] sm:$0xff]
    %v122 = vld [vmem:[%s118 + $0x18] sm:$0xff]
    %v123 = vld [vmem:[%s118 + $0x20] sm:$0xff]
    %v124 = vld [vmem:[%s118 + $0x28] sm:$0xff]
    %v125 = vadd.f32 %v112, %v119
    %v126 = vadd.f32 %v113, %v120
    %v127 = vadd.f32 %v114, %v121
    %v128 = vadd.f32 %v115, %v122
    %v129 = vadd.f32 %v116, %v123
    %v130 = vadd.f32 %v117, %v124
    %s131 = scalar_lea.vmem [#allocation2], 288
    %v132 = vld [vmem:[%s131] sm:$0xff]
    %v133 = vld [vmem:[%s131 + $0x8] sm:$0xff]
    %v134 = vld [vmem:[%s131 + $0x10] sm:$0xff]
    %v135 = vld [vmem:[%s131 + $0x18] sm:$0xff]
    %v136 = vld [vmem:[%s131 + $0x20] sm:$0xff]
    %v137 = vld [vmem:[%s131 + $0x28] sm:$0xff]
    %v138 = vadd.f32 %v125, %v132
    %v139 = vadd.f32 %v126, %v133
    %v140 = vadd.f32 %v127, %v134
    %v141 = vadd.f32 %v128, %v135
    %v142 = vadd.f32 %v129, %v136
    %v143 = vadd.f32 %v130, %v137
    %s144 = scalar_lea.vmem [#allocation2], 336
    %v145 = vld [vmem:[%s144] sm:$0xff]
    %v146 = vld [vmem:[%s144 + $0x8] sm:$0xff]
    %v147 = vld [vmem:[%s144 + $0x10] sm:$0xff]
    %v148 = vld [vmem:[%s144 + $0x18] sm:$0xff]
    %v149 = vld [vmem:[%s144 + $0x20] sm:$0xff]
    %v150 = vld [vmem:[%s144 + $0x28] sm:$0xff]
    %v151 = vadd.f32 %v138, %v145
    %v152 = vadd.f32 %v139, %v146
    %v153 = vadd.f32 %v140, %v147
    %v154 = vadd.f32 %v141, %v148
    %v155 = vadd.f32 %v142, %v149
    %v156 = vadd.f32 %v143, %v150
    %v157 = vld [vmem:[#allocation5] sm:$0xff]
    %v158 = vld [vmem:[#allocation5 + $0x8] sm:$0xff]
    %v159 = vld [vmem:[#allocation5 + $0x10] sm:$0xff]
    %v160 = vld [vmem:[#allocation5 + $0x18] sm:$0xff]
    %v161 = vld [vmem:[#allocation5 + $0x20] sm:$0xff]
    %v162 = vld [vmem:[#allocation5 + $0x28] sm:$0xff]
    %v163 = vld [vmem:[#allocation5 + $0x30] sm:$0xff]
    %v164 = vld [vmem:[#allocation5 + $0x38] sm:$0xff]
    %v165 = vld [vmem:[#allocation5 + $0x40] sm:$0xff]
    %v166 = vld [vmem:[#allocation5 + $0x48] sm:$0xff]
    %v167 = vld [vmem:[#allocation5 + $0x50] sm:$0xff]
    %v168 = vld [vmem:[#allocation5 + $0x58] sm:$0xff]
    %v169 = vld [vmem:[#allocation5 + $0x60] sm:$0xff]
    %v170 = vld [vmem:[#allocation5 + $0x68] sm:$0xff]
    %v171 = vld [vmem:[#allocation5 + $0x70] sm:$0xff]
    %v172 = vld [vmem:[#allocation5 + $0x78] sm:$0xff]
    %v173 = vld [vmem:[#allocation5 + $0x80] sm:$0xff]
    %v174 = vld [vmem:[#allocation5 + $0x88] sm:$0xff]
    %v175 = vld [vmem:[#allocation5 + $0x90] sm:$0xff]
    %v176 = vld [vmem:[#allocation5 + $0x98] sm:$0xff]
    %v177 = vld [vmem:[#allocation5 + $0xa0] sm:$0xff]
    %v178 = vld [vmem:[#allocation5 + $0xa8] sm:$0xff]
    %v179 = vld [vmem:[#allocation5 + $0xb0] sm:$0xff]
    %v180 = vld [vmem:[#allocation5 + $0xb8] sm:$0xff]
    %v181 = vld [vmem:[#allocation5 + $0xc0] sm:$0xff]
    %v182 = vld [vmem:[#allocation5 + $0xc8] sm:$0xff]
    %v183 = vld [vmem:[#allocation5 + $0xd0] sm:$0xff]
    %v184 = vld [vmem:[#allocation5 + $0xd8] sm:$0xff]
    %v185 = vld [vmem:[#allocation5 + $0xe0] sm:$0xff]
    %v186 = vld [vmem:[#allocation5 + $0xe8] sm:$0xff]
    %v187 = vld [vmem:[#allocation5 + $0xf0] sm:$0xff]
    %v188 = vld [vmem:[#allocation5 + $0xf8] sm:$0xff]
    %v189 = vld [vmem:[#allocation5 + $0x100] sm:$0xff]
    %v190 = vld [vmem:[#allocation5 + $0x108] sm:$0xff]
    %v191 = vld [vmem:[#allocation5 + $0x110] sm:$0xff]
    %v192 = vld [vmem:[#allocation5 + $0x118] sm:$0xff]
    %v193 = vld [vmem:[#allocation5 + $0x120] sm:$0xff]
    %v194 = vld [vmem:[#allocation5 + $0x128] sm:$0xff]
    %v195 = vld [vmem:[#allocation5 + $0x130] sm:$0xff]
    %v196 = vld [vmem:[#allocation5 + $0x138] sm:$0xff]
    %v197 = vld [vmem:[#allocation5 + $0x140] sm:$0xff]
    %v198 = vld [vmem:[#allocation5 + $0x148] sm:$0xff]
    %v199 = vld [vmem:[#allocation5 + $0x150] sm:$0xff]
    %v200 = vld [vmem:[#allocation5 + $0x158] sm:$0xff]
    %v201 = vld [vmem:[#allocation5 + $0x160] sm:$0xff]
    %v202 = vld [vmem:[#allocation5 + $0x168] sm:$0xff]
    %v203 = vld [vmem:[#allocation5 + $0x170] sm:$0xff]
    %v204 = vld [vmem:[#allocation5 + $0x178] sm:$0xff]
    %v205 = vld [vmem:[#allocation5 + $0x180] sm:$0xff]
    %v206 = vld [vmem:[#allocation5 + $0x188] sm:$0xff]
    %v207 = vld [vmem:[#allocation5 + $0x190] sm:$0xff]
    %v208 = vld [vmem:[#allocation5 + $0x198] sm:$0xff]
    %v209 = vld [vmem:[#allocation5 + $0x1a0] sm:$0xff]
    %v210 = vld [vmem:[#allocation5 + $0x1a8] sm:$0xff]
    %v211 = vld [vmem:[#allocation5 + $0x1b0] sm:$0xff]
    %v212 = vld [vmem:[#allocation5 + $0x1b8] sm:$0xff]
    %v213 = vld [vmem:[#allocation5 + $0x1c0] sm:$0xff]
    %v214 = vld [vmem:[#allocation5 + $0x1c8] sm:$0xff]
    %v215 = vld [vmem:[#allocation5 + $0x1d0] sm:$0xff]
    %v216 = vld [vmem:[#allocation5 + $0x1d8] sm:$0xff]
    %v217 = vld [vmem:[#allocation5 + $0x1e0] sm:$0xff]
    %v218 = vld [vmem:[#allocation5 + $0x1e8] sm:$0xff]
    %v219 = vld [vmem:[#allocation5 + $0x1f0] sm:$0xff]
    %v220 = vld [vmem:[#allocation5 + $0x1f8] sm:$0xff]
    %v221 = vld [vmem:[#allocation5 + $0x200] sm:$0xff]
    %v222 = vld [vmem:[#allocation5 + $0x208] sm:$0xff]
    %v223 = vld [vmem:[#allocation5 + $0x210] sm:$0xff]
    %v224 = vld [vmem:[#allocation5 + $0x218] sm:$0xff]
    %v225 = vld [vmem:[#allocation5 + $0x220] sm:$0xff]
    %v226 = vld [vmem:[#allocation5 + $0x228] sm:$0xff]
    %v227 = vld [vmem:[#allocation5 + $0x230] sm:$0xff]
    %v228 = vld [vmem:[#allocation5 + $0x238] sm:$0xff]
    %v229 = vld [vmem:[#allocation5 + $0x240] sm:$0xff]
    %v230 = vld [vmem:[#allocation5 + $0x248] sm:$0xff]
    %v231 = vld [vmem:[#allocation5 + $0x250] sm:$0xff]
    %v232 = vld [vmem:[#allocation5 + $0x258] sm:$0xff]
    %v233 = vld [vmem:[#allocation5 + $0x260] sm:$0xff]
    %v234 = vld [vmem:[#allocation5 + $0x268] sm:$0xff]
    %v235 = vld [vmem:[#allocation5 + $0x270] sm:$0xff]
    %v236 = vld [vmem:[#allocation5 + $0x278] sm:$0xff]
    %v237 = vld [vmem:[#allocation5 + $0x280] sm:$0xff]
    %v238 = vld [vmem:[#allocation5 + $0x288] sm:$0xff]
    %v239 = vld [vmem:[#allocation5 + $0x290] sm:$0xff]
    %v240 = vld [vmem:[#allocation5 + $0x298] sm:$0xff]
    %v241 = vld [vmem:[#allocation5 + $0x2a0] sm:$0xff]
    %v242 = vld [vmem:[#allocation5 + $0x2a8] sm:$0xff]
    %v243 = vld [vmem:[#allocation5 + $0x2b0] sm:$0xff]
    %v244 = vld [vmem:[#allocation5 + $0x2b8] sm:$0xff]
    %v245 = vld [vmem:[#allocation5 + $0x2c0] sm:$0xff]
    %v246 = vld [vmem:[#allocation5 + $0x2c8] sm:$0xff]
    %v247 = vld [vmem:[#allocation5 + $0x2d0] sm:$0xff]
    %v248 = vld [vmem:[#allocation5 + $0x2d8] sm:$0xff]
    %v249 = vld [vmem:[#allocation5 + $0x2e0] sm:$0xff]
    %v250 = vld [vmem:[#allocation5 + $0x2e8] sm:$0xff]
    %v251 = vld [vmem:[#allocation5 + $0x2f0] sm:$0xff]
    %v252 = vld [vmem:[#allocation5 + $0x2f8] sm:$0xff]
    %253 = vmatprep.subr.mxu0 0.0
    %254 = vmatpush1.msra.mxu0 %v157
    %255 = vmatprep.subr.mxu0 0.0
    %256 = vmatpush1.msra.mxu0 %v158
    %257 = vmatprep.subr.mxu0 0.0
    %258 = vmatpush1.msra.mxu0 %v159
    %259 = vmatprep.subr.mxu0 0.0
    %260 = vmatpush1.msra.mxu0 %v160
    %261 = vmatprep.subr.mxu0 0.0
    %262 = vmatpush1.msra.mxu0 %v161
    %263 = vmatprep.subr.mxu0 0.0
    %264 = vmatpush1.msra.mxu0 %v162
    %265 = vmatprep.subr.mxu0 0.0
    %266 = vmatpush1.msra.mxu0 %v163
    %267 = vmatprep.subr.mxu0 0.0
    %268 = vmatpush1.msra.mxu0 %v164
    %269 = vmatprep.subr.mxu0 0.0
    %270 = vmatpush1.msra.mxu0 %v165
    %271 = vmatprep.subr.mxu0 0.0
    %272 = vmatpush1.msra.mxu0 %v166
    %273 = vmatprep.subr.mxu0 0.0
    %274 = vmatpush1.msra.mxu0 %v167
    %275 = vmatprep.subr.mxu0 0.0
    %276 = vmatpush1.msra.mxu0 %v168
    %277 = vmatprep.subr.mxu0 0.0
    %278 = vmatpush1.msra.mxu0 %v169
    %279 = vmatprep.subr.mxu0 0.0
    %280 = vmatpush1.msra.mxu0 %v170
    %281 = vmatprep.subr.mxu0 0.0
    %282 = vmatpush1.msra.mxu0 %v171
    %283 = vmatprep.subr.mxu0 0.0
    %284 = vmatpush1.msra.mxu0 %v172
    %285 = vmatprep.subr.mxu0 0.0
    %286 = vmatpush1.msra.mxu0 %v173
    %287 = vmatprep.subr.mxu0 0.0
    %288 = vmatpush1.msra.mxu0 %v174
    %289 = vmatprep.subr.mxu0 0.0
    %290 = vmatpush1.msra.mxu0 %v175
    %291 = vmatprep.subr.mxu0 0.0
    %292 = vmatpush1.msra.mxu0 %v176
    %293 = vmatprep.subr.mxu0 0.0
    %294 = vmatpush1.msra.mxu0 %v177
    %295 = vmatprep.subr.mxu0 0.0
    %296 = vmatpush1.msra.mxu0 %v178
    %297 = vmatprep.subr.mxu0 0.0
    %298 = vmatpush1.msra.mxu0 %v179
    %299 = vmatprep.subr.mxu0 0.0
    %300 = vmatpush1.msra.mxu0 %v180
    %301 = vmatprep.subr.mxu0 0.0
    %302 = vmatpush1.msra.mxu0 %v181
    %303 = vmatprep.subr.mxu0 0.0
    %304 = vmatpush1.msra.mxu0 %v182
    %305 = vmatprep.subr.mxu0 0.0
    %306 = vmatpush1.msra.mxu0 %v183
    %307 = vmatprep.subr.mxu0 0.0
    %308 = vmatpush1.msra.mxu0 %v184
    %309 = vmatprep.subr.mxu0 0.0
    %310 = vmatpush1.msra.mxu0 %v185
    %311 = vmatprep.subr.mxu0 0.0
    %312 = vmatpush1.msra.mxu0 %v186
    %313 = vmatprep.subr.mxu0 0.0
    %314 = vmatpush1.msra.mxu0 %v187
    %315 = vmatprep.subr.mxu0 0.0
    %316 = vmatpush1.msra.mxu0 %v188
    %317 = vmatprep.mubr.f32.mxu0 %v152
    %318 = vmatmul.mubr.f32.gmra.mrb[0].mxu0 %v151
    %v319 = vpop.f32.mrb[0].mxu0
    %v320 = vadd.f32 0.0, %v319
    %v321 = vpop.f32.mrb[0].mxu0
    %322 = vdwg.mxu0
    %323 = vmatprep.subr.mxu0 0.0
    %324 = vmatpush1.msra.mxu0 %v189
    %325 = vmatprep.subr.mxu0 0.0
    %326 = vmatpush1.msra.mxu0 %v190
    %327 = vmatprep.subr.mxu0 0.0
    %328 = vmatpush1.msra.mxu0 %v191
    %329 = vmatprep.subr.mxu0 0.0
    %330 = vmatpush1.msra.mxu0 %v192
    %331 = vmatprep.subr.mxu0 0.0
    %332 = vmatpush1.msra.mxu0 %v193
    %333 = vmatprep.subr.mxu0 0.0
    %334 = vmatpush1.msra.mxu0 %v194
    %335 = vmatprep.subr.mxu0 0.0
    %336 = vmatpush1.msra.mxu0 %v195
    %337 = vmatprep.subr.mxu0 0.0
    %338 = vmatpush1.msra.mxu0 %v196
    %339 = vmatprep.subr.mxu0 0.0
    %340 = vmatpush1.msra.mxu0 %v197
    %341 = vmatprep.subr.mxu0 0.0
    %342 = vmatpush1.msra.mxu0 %v198
    %343 = vmatprep.subr.mxu0 0.0
    %344 = vmatpush1.msra.mxu0 %v199
    %345 = vmatprep.subr.mxu0 0.0
    %346 = vmatpush1.msra.mxu0 %v200
    %347 = vmatprep.subr.mxu0 0.0
    %348 = vmatpush1.msra.mxu0 %v201
    %349 = vmatprep.subr.mxu0 0.0
    %350 = vmatpush1.msra.mxu0 %v202
    %351 = vmatprep.subr.mxu0 0.0
    %352 = vmatpush1.msra.mxu0 %v203
    %353 = vmatprep.subr.mxu0 0.0
    %354 = vmatpush1.msra.mxu0 %v204
    %355 = vmatprep.subr.mxu0 0.0
    %356 = vmatpush1.msra.mxu0 %v205
    %357 = vmatprep.subr.mxu0 0.0
    %358 = vmatpush1.msra.mxu0 %v206
    %359 = vmatprep.subr.mxu0 0.0
    %360 = vmatpush1.msra.mxu0 %v207
    %361 = vmatprep.subr.mxu0 0.0
    %362 = vmatpush1.msra.mxu0 %v208
    %363 = vmatprep.subr.mxu0 0.0
    %364 = vmatpush1.msra.mxu0 %v209
    %365 = vmatprep.subr.mxu0 0.0
    %366 = vmatpush1.msra.mxu0 %v210
    %367 = vmatprep.subr.mxu0 0.0
    %368 = vmatpush1.msra.mxu0 %v211
    %369 = vmatprep.subr.mxu0 0.0
    %370 = vmatpush1.msra.mxu0 %v212
    %371 = vmatprep.subr.mxu0 0.0
    %372 = vmatpush1.msra.mxu0 %v213
    %373 = vmatprep.subr.mxu0 0.0
    %374 = vmatpush1.msra.mxu0 %v214
    %375 = vmatprep.subr.mxu0 0.0
    %376 = vmatpush1.msra.mxu0 %v215
    %377 = vmatprep.subr.mxu0 0.0
    %378 = vmatpush1.msra.mxu0 %v216
    %379 = vmatprep.subr.mxu0 0.0
    %380 = vmatpush1.msra.mxu0 %v217
    %381 = vmatprep.subr.mxu0 0.0
    %382 = vmatpush1.msra.mxu0 %v218
    %383 = vmatprep.subr.mxu0 0.0
    %384 = vmatpush1.msra.mxu0 %v219
    %385 = vmatprep.subr.mxu0 0.0
    %386 = vmatpush1.msra.mxu0 %v220
    %387 = vmatprep.mubr.f32.mxu0 %v154
    %388 = vmatmul.mubr.f32.gmra.mrb[0].mxu0 %v153
    %v389 = vpop.f32.mrb[0].mxu0
    %v390 = vadd.f32 %v320, %v389
    %v391 = vpop.f32.mrb[0].mxu0
    %392 = vdwg.mxu0
    %393 = vmatprep.subr.mxu0 0.0
    %394 = vmatpush1.msra.mxu0 %v221
    %395 = vmatprep.subr.mxu0 0.0
    %396 = vmatpush1.msra.mxu0 %v222
    %397 = vmatprep.subr.mxu0 0.0
    %398 = vmatpush1.msra.mxu0 %v223
    %399 = vmatprep.subr.mxu0 0.0
    %400 = vmatpush1.msra.mxu0 %v224
    %401 = vmatprep.subr.mxu0 0.0
    %402 = vmatpush1.msra.mxu0 %v225
    %403 = vmatprep.subr.mxu0 0.0
    %404 = vmatpush1.msra.mxu0 %v226
    %405 = vmatprep.subr.mxu0 0.0
    %406 = vmatpush1.msra.mxu0 %v227
    %407 = vmatprep.subr.mxu0 0.0
    %408 = vmatpush1.msra.mxu0 %v228
    %409 = vmatprep.subr.mxu0 0.0
    %410 = vmatpush1.msra.mxu0 %v229
    %411 = vmatprep.subr.mxu0 0.0
    %412 = vmatpush1.msra.mxu0 %v230
    %413 = vmatprep.subr.mxu0 0.0
    %414 = vmatpush1.msra.mxu0 %v231
    %415 = vmatprep.subr.mxu0 0.0
    %416 = vmatpush1.msra.mxu0 %v232
    %417 = vmatprep.subr.mxu0 0.0
    %418 = vmatpush1.msra.mxu0 %v233
    %419 = vmatprep.subr.mxu0 0.0
    %420 = vmatpush1.msra.mxu0 %v234
    %421 = vmatprep.subr.mxu0 0.0
    %422 = vmatpush1.msra.mxu0 %v235
    %423 = vmatprep.subr.mxu0 0.0
    %424 = vmatpush1.msra.mxu0 %v236
    %425 = vmatprep.subr.mxu0 0.0
    %426 = vmatpush1.msra.mxu0 %v237
    %427 = vmatprep.subr.mxu0 0.0
    %428 = vmatpush1.msra.mxu0 %v238
    %429 = vmatprep.subr.mxu0 0.0
    %430 = vmatpush1.msra.mxu0 %v239
    %431 = vmatprep.subr.mxu0 0.0
    %432 = vmatpush1.msra.mxu0 %v240
    %433 = vmatprep.subr.mxu0 0.0
    %434 = vmatpush1.msra.mxu0 %v241
    %435 = vmatprep.subr.mxu0 0.0
    %436 = vmatpush1.msra.mxu0 %v242
    %437 = vmatprep.subr.mxu0 0.0
    %438 = vmatpush1.msra.mxu0 %v243
    %439 = vmatprep.subr.mxu0 0.0
    %440 = vmatpush1.msra.mxu0 %v244
    %441 = vmatprep.subr.mxu0 0.0
    %442 = vmatpush1.msra.mxu0 %v245
    %443 = vmatprep.subr.mxu0 0.0
    %444 = vmatpush1.msra.mxu0 %v246
    %445 = vmatprep.subr.mxu0 0.0
    %446 = vmatpush1.msra.mxu0 %v247
    %447 = vmatprep.subr.mxu0 0.0
    %448 = vmatpush1.msra.mxu0 %v248
    %449 = vmatprep.subr.mxu0 0.0
    %450 = vmatpush1.msra.mxu0 %v249
    %451 = vmatprep.subr.mxu0 0.0
    %452 = vmatpush1.msra.mxu0 %v250
    %453 = vmatprep.subr.mxu0 0.0
    %454 = vmatpush1.msra.mxu0 %v251
    %455 = vmatprep.subr.mxu0 0.0
    %456 = vmatpush1.msra.mxu0 %v252
    %457 = vmatprep.mubr.f32.mxu0 %v156
    %458 = vmatmul.mubr.f32.gmra.mrb[0].mxu0 %v155
    %v459 = vpop.f32.mrb[0].mxu0
    %v460 = vadd.f32 %v390, %v459
    %v461 = vpop.f32.mrb[0].mxu0
    %462 = vdwg.mxu0
    %v463 = vmul.f32 %v460, 0.125
    %v464 = vld [vmem:[#allocation7] sm:$0x1]
    %v466 = vlaneseq
    %v467 = vshrl.u32 %v466, 7
    %v468 = vsub.s32 0, %v467
    %v469 = vrot.slane %v464, %v468
    %v471 = vadd.f32 %v463, %v469
    %vm472 = vcmask 15360
    %473 = vst.msk [vmem:[#allocation8] sm:$0xff] %vm472, %v471
    // Predicated region
    $region26: #{tpu_custom_call.1} parent=1 // pred_check
      _
    $region27: #{tpu_custom_call.1} parent=1 // pred_check_branch
      %475 = sbr.rel (0) target = $region29
    $region28: #{tpu_custom_call.1} parent=1 // pred_region
      %s477 = ssub.s32 128, 128
      %478 = vsyncadd [#allocation4], %s477
      %s480 = sshll.u32 [#allocation8], 4
      %s481 = int_to_ptr.vmem [resolvable:$true] %s480
      %483 = dma.vmem_to_hbm [thread:$0]  %s481, 128, %s3, [#allocation4]
    $region29: #{tpu_custom_call.1} parent=1 // pred_fallthru
      _
    // Predicated region
    $region30: #{tpu_custom_call.1} parent=1 // pred_check
      _
    $region31: #{tpu_custom_call.1} parent=1 // pred_check_branch
      %485 = sbr.rel (0) target = $region33
    $region32: #{tpu_custom_call.1} parent=1 // pred_region
      %486 = dma.done [#allocation4], 128
    $region33: #{tpu_custom_call.1} parent=1 // pred_fallthru
      _
    %487 = vsyncpa [#allocation3], 1
    %488 = vsyncpa [#allocation6], 1
    %489 = vsyncpa [#allocation4], 1

</llo_original>
